<compile_context>
chip_gen: v7x
topology: tpu7x:2x2x1
jax: 0.10.0
libtpu: 0.0.40
codegen_flags: <defaults>
</compile_context>

<pallas_src>
import functools

import jax
import jax.numpy as jnp
from jax.experimental import pallas as pl
from jax.experimental.pallas import tpu as pltpu


_LN_EPS = 1e-5        # torch.nn.LayerNorm default
_L2_EPS = 1e-12       # tiny eps so an all-zero row does not produce NaN
_SQRT_HALF = 0.7071067811865476


def _round_up(x, m):
    return ((x + m - 1) // m) * m


def _gelu_exact(x):
    # Matches torch.nn.functional.gelu default (erf-based, exact), f32 math.
    # (On v5e the tanh approximation would move work to the EUP slot, but we
    # keep torch-exact semantics.)
    return 0.5 * x * (1.0 + jax.lax.erf(x * jnp.float32(_SQRT_HALF)))


def _pad2(x, rows, cols):
    r, c = x.shape
    return jnp.pad(x, ((0, rows - r), (0, cols - c)))


def _row_pad(b):
    # Sublane (8) alignment is enough at small batch; only widen the logits
    # lane dim to 128 when the batch is large enough for lane-dense stores /
    # full MXU tiles to actually pay off.
    return _round_up(max(b, 8), 8) if b < 128 else _round_up(b, 128)


def _mxu_lane_unit():
    # v6e/v7x MXU passes are 256 wide; v5e/v5p (and older) are 128.
    try:
        kind = jax.devices()[0].device_kind.lower()
    except Exception:
        return 128
    return 256 if ("v6" in kind or "v7" in kind) else 128


def _align_feature_dim(n, unit):
    # Only round up to 256 when the true dim is big enough to benefit
    # (>= ~192); small dims stay 128-aligned so we do not add padding work.
    u = unit if n >= 192 else 128
    return _round_up(max(n, 1), u)


def _vmem_limit(block_bytes):
    # Double-buffered blocks + headroom, clamped to a safe scoped-VMEM range
    # (v7x only has 64 MiB of physical VMEM per TensorCore).
    return int(min(max(4 * block_bytes, 16 * 1024 * 1024), 64 * 1024 * 1024))


# ----------------------------- kernel math -----------------------------------

def _projection_head(x, w_proj, w_block, gamma, beta, dim):
    """ProjectionHead forward on zero-padded operands, f32 internal math.

    x       [rows, HP] bf16   (zero beyond the true batch / hidden extents)
    w_proj  [HP, DP]   bf16   (zero-padded)
    w_block [DP, DP]   bf16   (zero-padded)
    gamma   [1, DP]    f32    (zero beyond the true `dim` lanes)
    beta    [1, DP]    f32    (zero beyond the true `dim` lanes)

    Returns the L2-normalized embedding [rows, DP] f32; padded lanes stay 0.
    """
    f32 = jnp.float32

    # proj = x @ W_proj  (bf16 MXU operands, f32 accumulation)
    proj = jax.lax.dot_general(x, w_proj, (((1,), (0,)), ((), ())),
                               preferred_element_type=f32)

    # block = GELU(proj) @ W_block  (Dropout is identity in eval mode)
    # TODO(synk): Dropout(p=0.25) omitted (inference semantics).
    blk = jax.lax.dot_general(_gelu_exact(proj).astype(jnp.bfloat16), w_block,
                              (((1,), (0,)), ((), ())),
                              preferred_element_type=f32)
    out = proj + blk                     # exactly zero in lanes >= dim

    # LayerNorm over the true feature dim: two-pass variance with an explicit
    # lane mask so padded lanes never bias the statistics.
    inv_dim = f32(1.0 / dim)
    lane = jax.lax.broadcasted_iota(jnp.int32, out.shape, 1)
    mu = jnp.sum(out, axis=-1, keepdims=True) * inv_dim
    centered = jnp.where(lane < dim, out - mu, f32(0.0))
    var = jnp.sum(centered * centered, axis=-1, keepdims=True) * inv_dim
    ln = centered * jax.lax.rsqrt(var + f32(_LN_EPS)) * gamma + beta

    # L2 normalize along the last dim (rsqrt -> EUP; eps for NaN safety).
    return ln * jax.lax.rsqrt(jnp.sum(ln * ln, axis=-1, keepdims=True)
                              + f32(_L2_EPS))


def projection_head_kernel(x_ref, w_proj_ref, w_block_ref, gamma_ref, beta_ref,
                           emb_ref, *, dim):
    """Vision ProjectionHead -> L2-normalized embedding (bf16 output)."""
    emb = _projection_head(x_ref[...], w_proj_ref[...], w_block_ref[...],
                           gamma_ref[...], beta_ref[...], dim)
    emb_ref[...] = emb.astype(emb_ref.dtype)


def text_head_logits_kernel(x_ref, w_proj_ref, w_block_ref, gamma_ref, beta_ref,
                            vis_emb_ref, logits_ref, *, dim):
    """Text ProjectionHead fused with logits_per_text for one text-row tile."""
    temb = _projection_head(x_ref[...], w_proj_ref[...], w_block_ref[...],
                            gamma_ref[...], beta_ref[...], dim)
    # logits = text_emb @ vision_emb.T expressed as a (1,1) contraction so the
    # MXU contracts the shared lane dim without an XLU transpose.
    logits_ref[...] = jax.lax.dot_general(
        temb.astype(jnp.bfloat16), vis_emb_ref[...],
        dimension_numbers=(((1,), (1,)), ((), ())),
        preferred_element_type=jnp.float32)


# ------------------------------ wrappers --------------------------------------

def prepare_clip_head_params(params, hidden_text, hidden_vision, dim):
    """Pad / cast / lay out the projection-head weights ONCE (not per call)."""
    unit = _mxu_lane_unit()
    hpt = _align_feature_dim(hidden_text, unit)
    hpv = _align_feature_dim(hidden_vision, unit)
    dp = _align_feature_dim(dim, unit)
    bf16 = jnp.bfloat16

    def prep(head, hp):
        p = params[head]
        return {
            "w_proj": _pad2(p["w_proj"], hp, dp).astype(bf16),
            "w_block": _pad2(p["w_block"], dp, dp).astype(bf16),
            # gamma/beta stay zero-padded f32: the padded-lane LayerNorm /
            # L2-norm argument relies on this invariant.
            "ln_gamma": _pad2(p["ln_gamma"], 1, dp),
            "ln_beta": _pad2(p["ln_beta"], 1, dp),
        }

    return {
        "text": prep("text", hpt),
        "vision": prep("vision", hpv),
        "hp_text": hpt,
        "hp_vision": hpv,
        "dp": dp,
        "dim": dim,
    }


def clip_heads_and_logits(nlp_feats, vis_feats, prepared):
    """Both ProjectionHeads + logits_per_text via two Pallas calls."""
    dim, dp = prepared["dim"], prepared["dp"]
    hpt, hpv = prepared["hp_text"], prepared["hp_vision"]
    tp, vp = prepared["text"], prepared["vision"]
    bf16 = jnp.bfloat16

    B = nlp_feats.shape[0]
    r = _row_pad(B)                        # rows: sublane-aligned at small B

    text_x = _pad2(nlp_feats, r, hpt).astype(bf16)
    vis_x = _pad2(vis_feats, r, hpv).astype(bf16)

    vmem = pl.BlockSpec(memory_space=pltpu.MemorySpace.VMEM)

    # ---- pass 1: vision ProjectionHead -> L2-normalized embedding ----------
    vis_bytes = (r * hpv + hpv * dp + dp * dp + r * dp) * 2 + 2 * dp * 4
    vis_emb = pl.pallas_call(
        functools.partial(projection_head_kernel, dim=dim),
        out_shape=jax.ShapeDtypeStruct((r, dp), bf16),
        in_specs=[vmem] * 5,
        out_specs=vmem,
        compiler_params=pltpu.CompilerParams(
            vmem_limit_bytes=_vmem_limit(vis_bytes)),
        cost_estimate=pl.CostEstimate(
            flops=2 * r * hpv * dp + 2 * r * dp * dp,
            transcendentals=r * dp,
            bytes_accessed=vis_bytes),
    )(vis_x, vp["w_proj"], vp["w_block"], vp["ln_gamma"], vp["ln_beta"])

    # ---- pass 2: text head fused with logits, tiled over text-row blocks ---
    # Grid is trivially (1,) at toy batch; at production B it shards text-row
    # tiles across TensorCores (v7x) while the vision embedding stays resident
    # in VMEM (constant index_map) and the logits output is written in
    # (tm, r) tiles so VMEM residency stays bounded.
    tm = r if r <= 128 else 128
    grid = (r // tm,)
    blk_bytes = ((tm * hpt + hpt * dp + dp * dp + r * dp) * 2
                 + 2 * dp * 4 + tm * r * 4)
    total_bytes = ((r * hpt + hpt * dp + dp * dp + r * dp) * 2
                   + 2 * dp * 4 + r * r * 4)
    logits = pl.pallas_call(
        functools.partial(text_head_logits_kernel, dim=dim),
        grid=grid,
        in_specs=[
            pl.BlockSpec((tm, hpt), lambda i: (i, 0)),    # text feats tile
            pl.BlockSpec((hpt, dp), lambda i: (0, 0)),    # w_proj (resident)
            pl.BlockSpec((dp, dp), lambda i: (0, 0)),     # w_block (resident)
            pl.BlockSpec((1, dp), lambda i: (0, 0)),      # gamma
            pl.BlockSpec((1, dp), lambda i: (0, 0)),      # beta
            pl.BlockSpec((r, dp), lambda i: (0, 0)),      # vision emb (resident)
        ],
        out_specs=pl.BlockSpec((tm, r), lambda i: (i, 0)),
        out_shape=jax.ShapeDtypeStruct((r, r), jnp.float32),
        compiler_params=pltpu.CompilerParams(
            dimension_semantics=("parallel",),
            vmem_limit_bytes=_vmem_limit(blk_bytes)),
        cost_estimate=pl.CostEstimate(
            flops=2 * r * hpt * dp + 2 * r * dp * dp + 2 * r * r * dp,
            transcendentals=r * dp,
            bytes_accessed=total_bytes),
    )(text_x, tp["w_proj"], tp["w_block"], tp["ln_gamma"], tp["ln_beta"],
      vis_emb)

    return logits[:B, :B]


# ------------------------ Synthetic backbone glue ---------------------------

def nlp_backbone_pooler(input_ids, attention_mask, p):
    """Stand-in for HF text transformer pooler_output: [B, hidden_text]."""
    emb = p["tok_emb"][input_ids]                                   # [B, S, H]
    mask = attention_mask.astype(jnp.float32)[..., None]            # [B, S, 1]
    pooled = jnp.sum(emb * mask, axis=1) / jnp.maximum(
        jnp.sum(mask, axis=1), 1.0)                                  # [B, H]
    return jnp.tanh(pooled @ p["pool_w"] + p["pool_b"])              # [B, H]


def vision_backbone_pooler(image, p, patch):
    """Stand-in for HF vision transformer pooler_output: [B, hidden_vision]."""
    B, C, H, W = image.shape
    gh, gw = H // patch, W // patch
    # NCHW -> [B, num_patches, C*patch*patch]
    x = image.reshape(B, C, gh, patch, gw, patch)
    x = x.transpose(0, 2, 4, 1, 3, 5).reshape(B, gh * gw, C * patch * patch)
    tokens = x @ p["patch_w"]                                        # [B, P, H]
    pooled = jnp.mean(tokens, axis=1)                                # [B, H]
    return jnp.tanh(pooled @ p["pool_w"] + p["pool_b"])              # [B, H]


# ------------------------------ Param init -----------------------------------

def make_params(key, hidden_text, hidden_vision, dim, vocab, patch, channels):
    ks = jax.random.split(key, 10)

    def dense(k, shape, scale):
        return jax.random.normal(k, shape, jnp.float32) * scale

    return {
        "text": {
            "w_proj": dense(ks[0], (hidden_text, dim), 0.05),
            "w_block": dense(ks[1], (dim, dim), 0.05),
            "ln_gamma": jnp.ones((1, dim), jnp.float32),
            "ln_beta": jnp.zeros((1, dim), jnp.float32),
        },
        "vision": {
            "w_proj": dense(ks[2], (hidden_vision, dim), 0.05),
            "w_block": dense(ks[3], (dim, dim), 0.05),
            "ln_gamma": jnp.ones((1, dim), jnp.float32),
            "ln_beta": jnp.zeros((1, dim), jnp.float32),
        },
        "nlp_backbone": {
            "tok_emb": dense(ks[4], (vocab, hidden_text), 0.1),
            "pool_w": dense(ks[5], (hidden_text, hidden_text), 0.05),
            "pool_b": jnp.zeros((hidden_text,), jnp.float32),
        },
        "vision_backbone": {
            "patch_w": dense(ks[6], (channels * patch * patch, hidden_vision), 0.05),
            "pool_w": dense(ks[7], (hidden_vision, hidden_vision), 0.05),
            "pool_b": jnp.zeros((hidden_vision,), jnp.float32),
        },
    }


def clip_forward(image, input_ids, attention_mask, params, prepared, patch):
    nlp_feats = nlp_backbone_pooler(input_ids, attention_mask,
                                    params["nlp_backbone"])
    vis_feats = vision_backbone_pooler(image, params["vision_backbone"], patch)
    return clip_heads_and_logits(nlp_feats, vis_feats, prepared)


# --------------------------- Pure-JAX reference ------------------------------

def _head_ref(x, p):
    proj = x @ p["w_proj"]
    blk = jax.nn.gelu(proj, approximate=False) @ p["w_block"]
    out = proj + blk
    mu = jnp.mean(out, axis=-1, keepdims=True)
    var = jnp.mean((out - mu) ** 2, axis=-1, keepdims=True)
    ln = (out - mu) * jax.lax.rsqrt(var + _LN_EPS) * p["ln_gamma"] + p["ln_beta"]
    return ln / jnp.linalg.norm(ln, axis=-1, keepdims=True)


def clip_heads_reference(nlp_feats, vis_feats, params):
    t = _head_ref(nlp_feats, params["text"])
    v = _head_ref(vis_feats, params["vision"])
    return t @ v.T


# --------------------------------- Main --------------------------------------

if __name__ == "__main__":
    B = 2
    C, H, W = 3, 16, 16
    PATCH = 8
    SEQ = 8
    VOCAB = 64
    HIDDEN_TEXT = 48
    HIDDEN_VISION = 64
    DIM = 32

    root = jax.random.PRNGKey(0)
    k_img, k_ids, k_params = jax.random.split(root, 3)

    image = jax.random.normal(k_img, (B, C, H, W), jnp.float32)       # NCHW
    input_ids = jax.random.randint(k_ids, (B, SEQ), 0, VOCAB, jnp.int32)
    attention_mask = jnp.ones((B, SEQ), jnp.int32).at[1, SEQ - 2:].set(0)

    params = make_params(k_params, HIDDEN_TEXT, HIDDEN_VISION, DIM,
                         VOCAB, PATCH, C)
    # Weights are padded / cast / laid out once, not per forward call.
    prepared = prepare_clip_head_params(params, HIDDEN_TEXT, HIDDEN_VISION, DIM)

    fwd = jax.jit(lambda im, ii, am: clip_forward(im, ii, am, params,
                                                  prepared, PATCH))
    logits = fwd(image, input_ids, attention_mask)
    jax.block_until_ready(logits)

    # Pure-JAX f32 reference of the head + logits path.
    nlp_feats = nlp_backbone_pooler(input_ids, attention_mask,
                                    params["nlp_backbone"])
    vis_feats = vision_backbone_pooler(image, params["vision_backbone"], PATCH)
    ref = clip_heads_reference(nlp_feats, vis_feats, params)

    assert logits.shape == (B, B), logits.shape
    assert bool(jnp.all(jnp.isfinite(logits)))
    # Embeddings are L2-normalized: cosine similarities (bf16 rounding slack).
    assert bool(jnp.all(jnp.abs(logits) <= 1.0 + 2e-2))
    assert float(jnp.max(jnp.abs(logits - ref))) < 6e-2, (logits, ref)

    print("KERNEL_OK")
</pallas_src>

<mosaic_0001>
module attributes {stable_mosaic.version = 11 : i64} {
  func.func @projection_head_kernel(%arg0: memref<8x128xbf16, #tpu.memory_space<vmem>>, %arg1: memref<128x128xbf16, #tpu.memory_space<vmem>>, %arg2: memref<128x128xbf16, #tpu.memory_space<vmem>>, %arg3: memref<1x128xf32, #tpu.memory_space<vmem>>, %arg4: memref<1x128xf32, #tpu.memory_space<vmem>>, %arg5: memref<8x128xbf16, #tpu.memory_space<vmem>>) attributes {dimension_semantics = [], scalar_prefetch = 0 : i64, scratch_operands = 0 : i64, tpu.core_type = #tpu.core_type<tc>} {
    %c0 = arith.constant 0 : index
    %c0_0 = arith.constant 0 : index
    %0 = vector.load %arg0[%c0, %c0_0] : memref<8x128xbf16, #tpu.memory_space<vmem>>, vector<8x128xbf16>
    %c0_1 = arith.constant 0 : index
    %c0_2 = arith.constant 0 : index
    %1 = vector.load %arg1[%c0_1, %c0_2] : memref<128x128xbf16, #tpu.memory_space<vmem>>, vector<128x128xbf16>
    %c0_3 = arith.constant 0 : index
    %c0_4 = arith.constant 0 : index
    %2 = vector.load %arg2[%c0_3, %c0_4] : memref<128x128xbf16, #tpu.memory_space<vmem>>, vector<128x128xbf16>
    %c0_5 = arith.constant 0 : index
    %c0_6 = arith.constant 0 : index
    %3 = vector.load %arg3[%c0_5, %c0_6] : memref<1x128xf32, #tpu.memory_space<vmem>>, vector<1x128xf32>
    %c0_7 = arith.constant 0 : index
    %c0_8 = arith.constant 0 : index
    %4 = vector.load %arg4[%c0_7, %c0_8] : memref<1x128xf32, #tpu.memory_space<vmem>>, vector<1x128xf32>
    %cst = arith.constant dense<0.000000e+00> : vector<8x128xf32>
    %5 = tpu.matmul %0, %1, %cst {dimension_numbers = #tpu.dot_dimension_numbers<[1], [0], [0], [1], [0, 0, 1, 1], [], []>} : vector<8x128xbf16>, vector<128x128xbf16>, vector<8x128xf32> -> vector<8x128xf32>
    %cst_9 = arith.constant 5.000000e-01 : f32
    %6 = vector.broadcast %cst_9 : f32 to vector<8x128xf32>
    %7 = arith.mulf %6, %5 : vector<8x128xf32>
    %cst_10 = arith.constant 0.707106769 : f32
    %8 = vector.broadcast %cst_10 : f32 to vector<8x128xf32>
    %9 = arith.mulf %5, %8 : vector<8x128xf32>
    %10 = math.erf %9 : vector<8x128xf32>
    %cst_11 = arith.constant 1.000000e+00 : f32
    %11 = vector.broadcast %cst_11 : f32 to vector<8x128xf32>
    %12 = arith.addf %11, %10 : vector<8x128xf32>
    %13 = arith.mulf %7, %12 : vector<8x128xf32>
    %14 = arith.truncf %13 : vector<8x128xf32> to vector<8x128xbf16>
    %cst_12 = arith.constant dense<0.000000e+00> : vector<8x128xf32>
    %15 = tpu.matmul %14, %2, %cst_12 {dimension_numbers = #tpu.dot_dimension_numbers<[1], [0], [0], [1], [0, 0, 1, 1], [], []>} : vector<8x128xbf16>, vector<128x128xbf16>, vector<8x128xf32> -> vector<8x128xf32>
    %16 = arith.addf %5, %15 : vector<8x128xf32>
    %17 = tpu.iota {dimensions = array<i32: 1>} : vector<8x128xi32>
    %cst_13 = arith.constant dense<0.000000e+00> : vector<8xf32>
    %18 = vector.multi_reduction <add>, %16, %cst_13 [1] : vector<8x128xf32> to vector<8xf32>
    %19 = vector.shape_cast %18 : vector<8xf32> to vector<8x1xf32>
    %cst_14 = arith.constant 3.125000e-02 : f32
    %20 = vector.broadcast %cst_14 : f32 to vector<8x1xf32>
    %21 = arith.mulf %19, %20 : vector<8x1xf32>
    %c32_i32 = arith.constant 32 : i32
    %22 = vector.broadcast %c32_i32 : i32 to vector<8x128xi32>
    %23 = arith.cmpi slt, %17, %22 : vector<8x128xi32>
    %24 = vector.broadcast %21 : vector<8x1xf32> to vector<8x128xf32>
    %25 = arith.subf %16, %24 : vector<8x128xf32>
    %cst_15 = arith.constant 0.000000e+00 : f32
    %26 = vector.broadcast %cst_15 : f32 to vector<8x128xf32>
    %27 = arith.select %23, %25, %26 : vector<8x128xi1>, vector<8x128xf32>
    %28 = arith.mulf %27, %27 : vector<8x128xf32>
    %cst_16 = arith.constant dense<0.000000e+00> : vector<8xf32>
    %29 = vector.multi_reduction <add>, %28, %cst_16 [1] : vector<8x128xf32> to vector<8xf32>
    %30 = vector.shape_cast %29 : vector<8xf32> to vector<8x1xf32>
    %cst_17 = arith.constant 3.125000e-02 : f32
    %31 = vector.broadcast %cst_17 : f32 to vector<8x1xf32>
    %32 = arith.mulf %30, %31 : vector<8x1xf32>
    %cst_18 = arith.constant 9.99999974E-6 : f32
    %33 = vector.broadcast %cst_18 : f32 to vector<8x1xf32>
    %34 = arith.addf %32, %33 : vector<8x1xf32>
    %35 = math.rsqrt %34 : vector<8x1xf32>
    %36 = vector.broadcast %35 : vector<8x1xf32> to vector<8x128xf32>
    %37 = arith.mulf %27, %36 : vector<8x128xf32>
    %38 = vector.broadcast %3 : vector<1x128xf32> to vector<8x128xf32>
    %39 = arith.mulf %37, %38 : vector<8x128xf32>
    %40 = vector.broadcast %4 : vector<1x128xf32> to vector<8x128xf32>
    %41 = arith.addf %39, %40 : vector<8x128xf32>
    %42 = arith.mulf %41, %41 : vector<8x128xf32>
    %cst_19 = arith.constant dense<0.000000e+00> : vector<8xf32>
    %43 = vector.multi_reduction <add>, %42, %cst_19 [1] : vector<8x128xf32> to vector<8xf32>
    %44 = vector.shape_cast %43 : vector<8xf32> to vector<8x1xf32>
    %cst_20 = arith.constant 9.99999996E-13 : f32
    %45 = vector.broadcast %cst_20 : f32 to vector<8x1xf32>
    %46 = arith.addf %44, %45 : vector<8x1xf32>
    %47 = math.rsqrt %46 : vector<8x1xf32>
    %48 = vector.broadcast %47 : vector<8x1xf32> to vector<8x128xf32>
    %49 = arith.mulf %41, %48 : vector<8x128xf32>
    %50 = arith.truncf %49 : vector<8x128xf32> to vector<8x128xbf16>
    %c0_21 = arith.constant 0 : index
    %c0_22 = arith.constant 0 : index
    %51 = vector.load %arg5[%c0_21, %c0_22] : memref<8x128xbf16, #tpu.memory_space<vmem>>, vector<8x128xbf16>
    tpu.vector_store %arg5[%c0_21, %c0_22], %50 {strides = array<i32>} : memref<8x128xbf16, #tpu.memory_space<vmem>>, vector<8x128xbf16>,
    return
  }
}

module attributes {stable_mosaic.version = 11 : i64} {
  func.func @text_head_logits_kernel(%arg0: i32, %arg1: memref<8x128xbf16, #tpu.memory_space<vmem>>, %arg2: memref<128x128xbf16, #tpu.memory_space<vmem>>, %arg3: memref<128x128xbf16, #tpu.memory_space<vmem>>, %arg4: memref<1x128xf32, #tpu.memory_space<vmem>>, %arg5: memref<1x128xf32, #tpu.memory_space<vmem>>, %arg6: memref<8x128xbf16, #tpu.memory_space<vmem>>, %arg7: memref<8x8xf32, #tpu.memory_space<vmem>>) attributes {dimension_semantics = [#tpu.dimension_semantics<parallel>], iteration_bounds = array<i64: 1>, scalar_prefetch = 0 : i64, scratch_operands = 0 : i64, tpu.core_type = #tpu.core_type<tc>, window_params = [{transform_indices = @transform_0, window_bounds = array<i64: 8, 128>}, {pipeline_mode = #tpu.pipeline_mode<synchronous>, transform_indices = @transform_1, window_bounds = array<i64: 128, 128>}, {pipeline_mode = #tpu.pipeline_mode<synchronous>, transform_indices = @transform_2, window_bounds = array<i64: 128, 128>}, {pipeline_mode = #tpu.pipeline_mode<synchronous>, transform_indices = @transform_3, window_bounds = array<i64: 1, 128>}, {pipeline_mode = #tpu.pipeline_mode<synchronous>, transform_indices = @transform_4, window_bounds = array<i64: 1, 128>}, {pipeline_mode = #tpu.pipeline_mode<synchronous>, transform_indices = @transform_5, window_bounds = array<i64: 8, 128>}, {transform_indices = @transform_6, window_bounds = array<i64: 8, 8>}]} {
    %c0 = arith.constant 0 : index
    %c0_0 = arith.constant 0 : index
    %0 = vector.load %arg1[%c0, %c0_0] : memref<8x128xbf16, #tpu.memory_space<vmem>>, vector<8x128xbf16>
    %c0_1 = arith.constant 0 : index
    %c0_2 = arith.constant 0 : index
    %1 = vector.load %arg2[%c0_1, %c0_2] : memref<128x128xbf16, #tpu.memory_space<vmem>>, vector<128x128xbf16>
    %c0_3 = arith.constant 0 : index
    %c0_4 = arith.constant 0 : index
    %2 = vector.load %arg3[%c0_3, %c0_4] : memref<128x128xbf16, #tpu.memory_space<vmem>>, vector<128x128xbf16>
    %c0_5 = arith.constant 0 : index
    %c0_6 = arith.constant 0 : index
    %3 = vector.load %arg4[%c0_5, %c0_6] : memref<1x128xf32, #tpu.memory_space<vmem>>, vector<1x128xf32>
    %c0_7 = arith.constant 0 : index
    %c0_8 = arith.constant 0 : index
    %4 = vector.load %arg5[%c0_7, %c0_8] : memref<1x128xf32, #tpu.memory_space<vmem>>, vector<1x128xf32>
    %cst = arith.constant dense<0.000000e+00> : vector<8x128xf32>
    %5 = tpu.matmul %0, %1, %cst {dimension_numbers = #tpu.dot_dimension_numbers<[1], [0], [0], [1], [0, 0, 1, 1], [], []>} : vector<8x128xbf16>, vector<128x128xbf16>, vector<8x128xf32> -> vector<8x128xf32>
    %cst_9 = arith.constant 5.000000e-01 : f32
    %6 = vector.broadcast %cst_9 : f32 to vector<8x128xf32>
    %7 = arith.mulf %6, %5 : vector<8x128xf32>
    %cst_10 = arith.constant 0.707106769 : f32
    %8 = vector.broadcast %cst_10 : f32 to vector<8x128xf32>
    %9 = arith.mulf %5, %8 : vector<8x128xf32>
    %10 = math.erf %9 : vector<8x128xf32>
    %cst_11 = arith.constant 1.000000e+00 : f32
    %11 = vector.broadcast %cst_11 : f32 to vector<8x128xf32>
    %12 = arith.addf %11, %10 : vector<8x128xf32>
    %13 = arith.mulf %7, %12 : vector<8x128xf32>
    %14 = arith.truncf %13 : vector<8x128xf32> to vector<8x128xbf16>
    %cst_12 = arith.constant dense<0.000000e+00> : vector<8x128xf32>
    %15 = tpu.matmul %14, %2, %cst_12 {dimension_numbers = #tpu.dot_dimension_numbers<[1], [0], [0], [1], [0, 0, 1, 1], [], []>} : vector<8x128xbf16>, vector<128x128xbf16>, vector<8x128xf32> -> vector<8x128xf32>
    %16 = arith.addf %5, %15 : vector<8x128xf32>
    %17 = tpu.iota {dimensions = array<i32: 1>} : vector<8x128xi32>
    %cst_13 = arith.constant dense<0.000000e+00> : vector<8xf32>
    %18 = vector.multi_reduction <add>, %16, %cst_13 [1] : vector<8x128xf32> to vector<8xf32>
    %19 = vector.shape_cast %18 : vector<8xf32> to vector<8x1xf32>
    %cst_14 = arith.constant 3.125000e-02 : f32
    %20 = vector.broadcast %cst_14 : f32 to vector<8x1xf32>
    %21 = arith.mulf %19, %20 : vector<8x1xf32>
    %c32_i32 = arith.constant 32 : i32
    %22 = vector.broadcast %c32_i32 : i32 to vector<8x128xi32>
    %23 = arith.cmpi slt, %17, %22 : vector<8x128xi32>
    %24 = vector.broadcast %21 : vector<8x1xf32> to vector<8x128xf32>
    %25 = arith.subf %16, %24 : vector<8x128xf32>
    %cst_15 = arith.constant 0.000000e+00 : f32
    %26 = vector.broadcast %cst_15 : f32 to vector<8x128xf32>
    %27 = arith.select %23, %25, %26 : vector<8x128xi1>, vector<8x128xf32>
    %28 = arith.mulf %27, %27 : vector<8x128xf32>
    %cst_16 = arith.constant dense<0.000000e+00> : vector<8xf32>
    %29 = vector.multi_reduction <add>, %28, %cst_16 [1] : vector<8x128xf32> to vector<8xf32>
    %30 = vector.shape_cast %29 : vector<8xf32> to vector<8x1xf32>
    %cst_17 = arith.constant 3.125000e-02 : f32
    %31 = vector.broadcast %cst_17 : f32 to vector<8x1xf32>
    %32 = arith.mulf %30, %31 : vector<8x1xf32>
    %cst_18 = arith.constant 9.99999974E-6 : f32
    %33 = vector.broadcast %cst_18 : f32 to vector<8x1xf32>
    %34 = arith.addf %32, %33 : vector<8x1xf32>
    %35 = math.rsqrt %34 : vector<8x1xf32>
    %36 = vector.broadcast %35 : vector<8x1xf32> to vector<8x128xf32>
    %37 = arith.mulf %27, %36 : vector<8x128xf32>
    %38 = vector.broadcast %3 : vector<1x128xf32> to vector<8x128xf32>
    %39 = arith.mulf %37, %38 : vector<8x128xf32>
    %40 = vector.broadcast %4 : vector<1x128xf32> to vector<8x128xf32>
    %41 = arith.addf %39, %40 : vector<8x128xf32>
    %42 = arith.mulf %41, %41 : vector<8x128xf32>
    %cst_19 = arith.constant dense<0.000000e+00> : vector<8xf32>
    %43 = vector.multi_reduction <add>, %42, %cst_19 [1] : vector<8x128xf32> to vector<8xf32>
    %44 = vector.shape_cast %43 : vector<8xf32> to vector<8x1xf32>
    %cst_20 = arith.constant 9.99999996E-13 : f32
    %45 = vector.broadcast %cst_20 : f32 to vector<8x1xf32>
    %46 = arith.addf %44, %45 : vector<8x1xf32>
    %47 = math.rsqrt %46 : vector<8x1xf32>
    %48 = vector.broadcast %47 : vector<8x1xf32> to vector<8x128xf32>
    %49 = arith.mulf %41, %48 : vector<8x128xf32>
    %50 = arith.truncf %49 : vector<8x128xf32> to vector<8x128xbf16>
    %c0_21 = arith.constant 0 : index
    %c0_22 = arith.constant 0 : index
    %51 = vector.load %arg6[%c0_21, %c0_22] : memref<8x128xbf16, #tpu.memory_space<vmem>>, vector<8x128xbf16>
    %cst_23 = arith.constant dense<0.000000e+00> : vector<8x8xf32>
    %52 = tpu.matmul %50, %51, %cst_23 {dimension_numbers = #tpu.dot_dimension_numbers<[1], [1], [0], [0], [0, 0, 1, 0], [], []>} : vector<8x128xbf16>, vector<8x128xbf16>, vector<8x8xf32> -> vector<8x8xf32>
    %c0_24 = arith.constant 0 : index
    %c0_25 = arith.constant 0 : index
    %53 = vector.load %arg7[%c0_24, %c0_25] : memref<8x8xf32, #tpu.memory_space<vmem>>, vector<8x8xf32>
    tpu.vector_store %arg7[%c0_24, %c0_25], %52 {strides = array<i32>} : memref<8x8xf32, #tpu.memory_space<vmem>>, vector<8x8xf32>,
    return
  }
  func.func @transform_0(%arg0: i32) -> (i32, i32) {
    %c0_i32 = arith.constant 0 : i32
    %c0_i32_0 = arith.constant 0 : i32
    return %arg0, %c0_i32 : i32, i32
  }
  func.func @transform_1(%arg0: i32) -> (i32, i32) {
    %c0_i32 = arith.constant 0 : i32
    %c0_i32_0 = arith.constant 0 : i32
    %c0_i32_1 = arith.constant 0 : i32
    return %c0_i32, %c0_i32_0 : i32, i32
  }
  func.func @transform_2(%arg0: i32) -> (i32, i32) {
    %c0_i32 = arith.constant 0 : i32
    %c0_i32_0 = arith.constant 0 : i32
    %c0_i32_1 = arith.constant 0 : i32
    return %c0_i32, %c0_i32_0 : i32, i32
  }
  func.func @transform_3(%arg0: i32) -> (i32, i32) {
    %c0_i32 = arith.constant 0 : i32
    %c0_i32_0 = arith.constant 0 : i32
    %c0_i32_1 = arith.constant 0 : i32
    return %c0_i32, %c0_i32_0 : i32, i32
  }
  func.func @transform_4(%arg0: i32) -> (i32, i32) {
    %c0_i32 = arith.constant 0 : i32
    %c0_i32_0 = arith.constant 0 : i32
    %c0_i32_1 = arith.constant 0 : i32
    return %c0_i32, %c0_i32_0 : i32, i32
  }
  func.func @transform_5(%arg0: i32) -> (i32, i32) {
    %c0_i32 = arith.constant 0 : i32
    %c0_i32_0 = arith.constant 0 : i32
    %c0_i32_1 = arith.constant 0 : i32
    return %c0_i32, %c0_i32_0 : i32, i32
  }
  func.func @transform_6(%arg0: i32) -> (i32, i32) {
    %c0_i32 = arith.constant 0 : i32
    %c0_i32_0 = arith.constant 0 : i32
    return %arg0, %c0_i32 : i32, i32
  }
}

</mosaic_0001>

<llo_original>
// kernel: _lambda_.2
$region0: #{_lambda_.2}
  #allocation0 [shape = 'u32[]', space=smem, size = 0x4, offset = 0x4, fixed_abs, tag = 'smem constant byte address 0x4 - core index']
  #allocation1 [shape = 'u32[144,128]{1,0:T(1,128)}', space=vmem, size = 0x12000, scoped, tag = 'internal scratch']
  %s0 = inlined_call_operand.vmem [shape: bf16[8,128], index: 0, kind: input, shape index: {}]
  %s1 = inlined_call_operand.vmem [shape: bf16[128,128], index: 1, kind: input, shape index: {}]
  %s2 = inlined_call_operand.vmem [shape: bf16[128,128], index: 2, kind: input, shape index: {}]
  %s3 = inlined_call_operand.vmem [shape: f32[1,128], index: 3, kind: input, shape index: {}]
  %s4 = inlined_call_operand.vmem [shape: f32[1,128], index: 4, kind: input, shape index: {}]
  %s5 = inlined_call_operand.vmem [shape: bf16[8,128], index: 5, kind: output, shape index: {}]
  %s6 = sld [smem:[#allocation0]]
  $region30: #{_lambda_.2} parent=0
    _
  %s8 = ssub.s32 1, %s6
  %s9 = scalar_select 0, %s8, %s6
  // Predicated region
  $region2: #{_lambda_.2} parent=0 // pred_check
    _
  $region3: #{_lambda_.2} parent=0 // pred_check_branch
    %11 = sbr.rel (0) target = $region5
  $region4: #{_lambda_.2} parent=0 // pred_region
    _
  $region5: #{_lambda_.2} parent=0 // pred_fallthru
    _
  // Predicated region
  $region6: #{_lambda_.2} parent=0 // pred_check
    _
  $region7: #{_lambda_.2} parent=0 // pred_check_branch
    %13 = sbr.rel (0) target = $region9
  $region8: #{_lambda_.2} parent=0 // pred_region
    _
  $region9: #{_lambda_.2} parent=0 // pred_fallthru
    _
  // Predicated region
  $region10: #{_lambda_.2} parent=0 // pred_check
    _
  $region11: #{_lambda_.2} parent=0 // pred_check_branch
    %15 = sbr.rel (0) target = $region13
  $region12: #{_lambda_.2} parent=0 // pred_region
    _
  $region13: #{_lambda_.2} parent=0 // pred_fallthru
    _
  // Predicated region
  $region14: #{_lambda_.2} parent=0 // pred_check
    _
  $region15: #{_lambda_.2} parent=0 // pred_check_branch
    %17 = sbr.rel (0) target = $region17
  $region16: #{_lambda_.2} parent=0 // pred_region
    _
  $region17: #{_lambda_.2} parent=0 // pred_fallthru
    _
  // Predicated region
  $region18: #{_lambda_.2} parent=0 // pred_check
    _
  $region19: #{_lambda_.2} parent=0 // pred_check_branch
    %19 = sbr.rel (0) target = $region21
  $region20: #{_lambda_.2} parent=0 // pred_region
    _
  $region21: #{_lambda_.2} parent=0 // pred_fallthru
    _
  %v21 = vld [vmem:[%s0] sm:$0xf]
  %v22 = vld [vmem:[%s1] sm:$0xf]
  %v23 = vld [vmem:[%s1 + $0x4] sm:$0xf]
  %v24 = vld [vmem:[%s1 + $0x8] sm:$0xf]
  %v25 = vld [vmem:[%s1 + $0xc] sm:$0xf]
  %v26 = vld [vmem:[%s1 + $0x10] sm:$0xf]
  %v27 = vld [vmem:[%s1 + $0x14] sm:$0xf]
  %v28 = vld [vmem:[%s1 + $0x18] sm:$0xf]
  %v29 = vld [vmem:[%s1 + $0x1c] sm:$0xf]
  %v30 = vld [vmem:[%s1 + $0x20] sm:$0xf]
  %v31 = vld [vmem:[%s1 + $0x24] sm:$0xf]
  %v32 = vld [vmem:[%s1 + $0x28] sm:$0xf]
  %v33 = vld [vmem:[%s1 + $0x2c] sm:$0xf]
  %v34 = vld [vmem:[%s1 + $0x30] sm:$0xf]
  %v35 = vld [vmem:[%s1 + $0x34] sm:$0xf]
  %v36 = vld [vmem:[%s1 + $0x38] sm:$0xf]
  %v37 = vld [vmem:[%s1 + $0x3c] sm:$0xf]
  %v38 = vld [vmem:[%s2] sm:$0xf]
  %v39 = vld [vmem:[%s2 + $0x4] sm:$0xf]
  %v40 = vld [vmem:[%s2 + $0x8] sm:$0xf]
  %v41 = vld [vmem:[%s2 + $0xc] sm:$0xf]
  %v42 = vld [vmem:[%s2 + $0x10] sm:$0xf]
  %v43 = vld [vmem:[%s2 + $0x14] sm:$0xf]
  %v44 = vld [vmem:[%s2 + $0x18] sm:$0xf]
  %v45 = vld [vmem:[%s2 + $0x1c] sm:$0xf]
  %v46 = vld [vmem:[%s2 + $0x20] sm:$0xf]
  %v47 = vld [vmem:[%s2 + $0x24] sm:$0xf]
  %v48 = vld [vmem:[%s2 + $0x28] sm:$0xf]
  %v49 = vld [vmem:[%s2 + $0x2c] sm:$0xf]
  %v50 = vld [vmem:[%s2 + $0x30] sm:$0xf]
  %v51 = vld [vmem:[%s2 + $0x34] sm:$0xf]
  %v52 = vld [vmem:[%s2 + $0x38] sm:$0xf]
  %v53 = vld [vmem:[%s2 + $0x3c] sm:$0xf]
  %v54 = vld [vmem:[%s3] sm:$0x1]
  %v55 = vld [vmem:[%s4] sm:$0x1]
  %v72 = vunpack.c.l.b16 %v22
  %v73 = vunpack.c.l.b16 %v23
  %v74 = vunpack.c.l.b16 %v24
  %v75 = vunpack.c.l.b16 %v25
  %v76 = vunpack.c.l.b16 %v26
  %v77 = vunpack.c.l.b16 %v27
  %v78 = vunpack.c.l.b16 %v28
  %v79 = vunpack.c.l.b16 %v29
  %v80 = vunpack.c.l.b16 %v30
  %v81 = vunpack.c.l.b16 %v31
  %v82 = vunpack.c.l.b16 %v32
  %v83 = vunpack.c.l.b16 %v33
  %v84 = vunpack.c.l.b16 %v34
  %v85 = vunpack.c.l.b16 %v35
  %v86 = vunpack.c.l.b16 %v36
  %v87 = vunpack.c.l.b16 %v37
  %v88 = vpack.c.b16 %v73, %v72
  %v89 = vpack.c.b16 %v75, %v74
  %v90 = vpack.c.b16 %v77, %v76
  %v91 = vpack.c.b16 %v79, %v78
  %v92 = vpack.c.b16 %v81, %v80
  %v93 = vpack.c.b16 %v83, %v82
  %v94 = vpack.c.b16 %v85, %v84
  %v95 = vpack.c.b16 %v87, %v86
  %104 = vmatprep.subr.bf16.mxu0 0
  %105 = vmatpush1.bf16.msra.mxu0 %v88
  %106 = vmatprep.subr.bf16.mxu0 0
  %107 = vmatpush1.bf16.msra.mxu0 %v89
  %108 = vmatprep.subr.bf16.mxu0 0
  %109 = vmatpush1.bf16.msra.mxu0 %v90
  %110 = vmatprep.subr.bf16.mxu0 0
  %111 = vmatpush1.bf16.msra.mxu0 %v91
  %112 = vmatprep.subr.bf16.mxu0 0
  %113 = vmatpush1.bf16.msra.mxu0 %v92
  %114 = vmatprep.subr.bf16.mxu0 0
  %115 = vmatpush1.bf16.msra.mxu0 %v93
  %116 = vmatprep.subr.bf16.mxu0 0
  %117 = vmatpush1.bf16.msra.mxu0 %v94
  %118 = vmatprep.subr.bf16.mxu0 0
  %119 = vmatpush1.bf16.msra.mxu0 %v95
  %120 = vmatprep.subr.bf16.mxu0 0
  %121 = vmatpush1.bf16.msra.mxu0 0
  %122 = vmatprep.subr.bf16.mxu0 0
  %123 = vmatpush1.bf16.msra.mxu0 0
  %124 = vmatprep.subr.bf16.mxu0 0
  %125 = vmatpush1.bf16.msra.mxu0 0
  %126 = vmatprep.subr.bf16.mxu0 0
  %127 = vmatpush1.bf16.msra.mxu0 0
  %128 = vmatprep.subr.bf16.mxu0 0
  %129 = vmatpush1.bf16.msra.mxu0 0
  %130 = vmatprep.subr.bf16.mxu0 0
  %131 = vmatpush1.bf16.msra.mxu0 0
  %132 = vmatprep.subr.bf16.mxu0 0
  %133 = vmatpush1.bf16.msra.mxu0 0
  %134 = vmatprep.subr.bf16.mxu0 0
  %135 = vmatpush1.bf16.msra.mxu0 0
  %136 = vmatprep.mubr.bf16.mxu0 0
  %137 = vmatmul.mubr.bf16.gmra.mrb[0].mxu0 %v21
  %v138 = vpop.f32.mrb[0].mxu0
  %v139 = vadd.f32 0.0, %v138
  %v140 = vpop.f32.mrb[0].mxu0
  %v141 = vpop.f32.mrb[0].mxu0
  %v142 = vpop.f32.mrb[0].mxu0
  %143 = vdwg.mxu0
  %v144 = vmul.f32 %v139, 0.5
  %v145 = vmul.f32 %v139, 0.70710677
  %v146 = verf.f32.pop %v145
  %v147 = vadd.f32 %v146, 1.0
  %v148 = vmul.f32 %v144, %v147
  %v149 = vpack.c.bf16 %v148, %v148
  %v166 = vunpack.c.l.b16 %v38
  %v167 = vunpack.c.l.b16 %v39
  %v168 = vunpack.c.l.b16 %v40
  %v169 = vunpack.c.l.b16 %v41
  %v170 = vunpack.c.l.b16 %v42
  %v171 = vunpack.c.l.b16 %v43
  %v172 = vunpack.c.l.b16 %v44
  %v173 = vunpack.c.l.b16 %v45
  %v174 = vunpack.c.l.b16 %v46
  %v175 = vunpack.c.l.b16 %v47
  %v176 = vunpack.c.l.b16 %v48
  %v177 = vunpack.c.l.b16 %v49
  %v178 = vunpack.c.l.b16 %v50
  %v179 = vunpack.c.l.b16 %v51
  %v180 = vunpack.c.l.b16 %v52
  %v181 = vunpack.c.l.b16 %v53
  %v182 = vpack.c.b16 %v167, %v166
  %v183 = vpack.c.b16 %v169, %v168
  %v184 = vpack.c.b16 %v171, %v170
  %v185 = vpack.c.b16 %v173, %v172
  %v186 = vpack.c.b16 %v175, %v174
  %v187 = vpack.c.b16 %v177, %v176
  %v188 = vpack.c.b16 %v179, %v178
  %v189 = vpack.c.b16 %v181, %v180
  %198 = vmatprep.subr.bf16.mxu0 0
  %199 = vmatpush1.bf16.msra.mxu0 %v182
  %200 = vmatprep.subr.bf16.mxu0 0
  %201 = vmatpush1.bf16.msra.mxu0 %v183
  %202 = vmatprep.subr.bf16.mxu0 0
  %203 = vmatpush1.bf16.msra.mxu0 %v184
  %204 = vmatprep.subr.bf16.mxu0 0
  %205 = vmatpush1.bf16.msra.mxu0 %v185
  %206 = vmatprep.subr.bf16.mxu0 0
  %207 = vmatpush1.bf16.msra.mxu0 %v186
  %208 = vmatprep.subr.bf16.mxu0 0
  %209 = vmatpush1.bf16.msra.mxu0 %v187
  %210 = vmatprep.subr.bf16.mxu0 0
  %211 = vmatpush1.bf16.msra.mxu0 %v188
  %212 = vmatprep.subr.bf16.mxu0 0
  %213 = vmatpush1.bf16.msra.mxu0 %v189
  %214 = vmatprep.subr.bf16.mxu0 0
  %215 = vmatpush1.bf16.msra.mxu0 0
  %216 = vmatprep.subr.bf16.mxu0 0
  %217 = vmatpush1.bf16.msra.mxu0 0
  %218 = vmatprep.subr.bf16.mxu0 0
  %219 = vmatpush1.bf16.msra.mxu0 0
  %220 = vmatprep.subr.bf16.mxu0 0
  %221 = vmatpush1.bf16.msra.mxu0 0
  %222 = vmatprep.subr.bf16.mxu0 0
  %223 = vmatpush1.bf16.msra.mxu0 0
  %224 = vmatprep.subr.bf16.mxu0 0
  %225 = vmatpush1.bf16.msra.mxu0 0
  %226 = vmatprep.subr.bf16.mxu0 0
  %227 = vmatpush1.bf16.msra.mxu0 0
  %228 = vmatprep.subr.bf16.mxu0 0
  %229 = vmatpush1.bf16.msra.mxu0 0
  %230 = vmatprep.mubr.bf16.mxu0 0
  %231 = vmatmul.mubr.bf16.gmra.mrb[0].mxu0 %v149
  %v232 = vpop.f32.mrb[0].mxu0
  %v233 = vadd.f32 0.0, %v232
  %v234 = vpop.f32.mrb[0].mxu0
  %v235 = vpop.f32.mrb[0].mxu0
  %v236 = vpop.f32.mrb[0].mxu0
  %237 = vdwg.mxu0
  %v238 = vadd.f32 %v139, %v233
  %v239 = vlaneseq
  %v240 = vand.u32 %v239, 127
  %241 = vadd.xlane.f32.xlu0 %v238
  %v242 = vpop.xlane.xlu0 %241
  %v243 = vmul.f32 %v242, 0.03125
  %vm244 = vcmp.lt.s32.totalorder %v240, 32
  %v245 = vsub.f32 %v238, %v243
  %v246 = vsel %vm244, %v245, 0.0
  %v247 = vmul.f32 %v246, %v246
  %248 = vadd.xlane.f32.xlu0 %v247
  %v249 = vpop.xlane.xlu0 %248
  %v250 = vmul.f32 %v249, 0.03125
  %v251 = vadd.f32 %v250, 1e-05
  %v252 = vrsqrt.pop %v251
  %v253 = vmul.f32 %v246, %v252
  %v255 = vlaneseq
  %v256 = vshrl.u32 %v255, 7
  %v257 = vsub.s32 0, %v256
  %v258 = vrot.slane %v54, %v257
  %v260 = vmul.f32 %v253, %v258
  %v262 = vlaneseq
  %v263 = vshrl.u32 %v262, 7
  %v264 = vsub.s32 0, %v263
  %v265 = vrot.slane %v55, %v264
  %v267 = vadd.f32 %v260, %v265
  %v268 = vmul.f32 %v267, %v267
  %269 = vadd.xlane.f32.xlu0 %v268
  %v270 = vpop.xlane.xlu0 %269
  %v271 = vadd.f32 %v270, 1e-12
  %v272 = vrsqrt.pop %v271
  %v273 = vmul.f32 %v267, %v272
  %v274 = vpack.c.bf16 %v273, %v273
  %275 = vst [vmem:[%s5] sm:$0xf] %v274
  // Predicated region
  $region22: #{_lambda_.2} parent=0 // pred_check
    _
  $region23: #{_lambda_.2} parent=0 // pred_check_branch
    %277 = sbr.rel (0) target = $region25
  $region24: #{_lambda_.2} parent=0 // pred_region
    _
  $region25: #{_lambda_.2} parent=0 // pred_fallthru
    _
  // Predicated region
  $region26: #{_lambda_.2} parent=0 // pred_check
    _
  $region27: #{_lambda_.2} parent=0 // pred_check_branch
    %279 = sbr.rel (0) target = $region29
  $region28: #{_lambda_.2} parent=0 // pred_region
    _
  $region29: #{_lambda_.2} parent=0 // pred_fallthru
    _

// kernel: _lambda_.3
$region0: #{_lambda_.3}
  #allocation0 [shape = 'u32[]', space=smem, size = 0x4, offset = 0x4, fixed_abs, tag = 'smem constant byte address 0x4 - core index']
  #allocation1 [shape = 'u32[144,128]{1,0:T(1,128)}', space=vmem, size = 0x12000, scoped, tag = 'internal scratch']
  %s0 = inlined_call_operand.vmem [shape: bf16[8,128], index: 0, kind: input, shape index: {}]
  %s1 = inlined_call_operand.vmem [shape: bf16[128,128], index: 1, kind: input, shape index: {}]
  %s2 = inlined_call_operand.vmem [shape: bf16[128,128], index: 2, kind: input, shape index: {}]
  %s3 = inlined_call_operand.vmem [shape: f32[1,128], index: 3, kind: input, shape index: {}]
  %s4 = inlined_call_operand.vmem [shape: f32[1,128], index: 4, kind: input, shape index: {}]
  %s5 = inlined_call_operand.vmem [shape: bf16[8,128], index: 5, kind: input, shape index: {}]
  %s6 = inlined_call_operand.vmem [shape: f32[8,8], index: 6, kind: output, shape index: {}]
  %s7 = sld [smem:[#allocation0]]
  $region34: #{_lambda_.3} parent=0
    _
  %s9 = ssub.s32 1, %s7
  %s10 = scalar_select 0, %s9, %s7
  // Predicated region
  $region2: #{_lambda_.3} parent=0 // pred_check
    _
  $region3: #{_lambda_.3} parent=0 // pred_check_branch
    %12 = sbr.rel (0) target = $region5
  $region4: #{_lambda_.3} parent=0 // pred_region
    _
  $region5: #{_lambda_.3} parent=0 // pred_fallthru
    _
  // Predicated region
  $region6: #{_lambda_.3} parent=0 // pred_check
    _
  $region7: #{_lambda_.3} parent=0 // pred_check_branch
    %14 = sbr.rel (0) target = $region9
  $region8: #{_lambda_.3} parent=0 // pred_region
    _
  $region9: #{_lambda_.3} parent=0 // pred_fallthru
    _
  // Predicated region
  $region10: #{_lambda_.3} parent=0 // pred_check
    _
  $region11: #{_lambda_.3} parent=0 // pred_check_branch
    %16 = sbr.rel (0) target = $region13
  $region12: #{_lambda_.3} parent=0 // pred_region
    _
  $region13: #{_lambda_.3} parent=0 // pred_fallthru
    _
  // Predicated region
  $region14: #{_lambda_.3} parent=0 // pred_check
    _
  $region15: #{_lambda_.3} parent=0 // pred_check_branch
    %18 = sbr.rel (0) target = $region17
  $region16: #{_lambda_.3} parent=0 // pred_region
    _
  $region17: #{_lambda_.3} parent=0 // pred_fallthru
    _
  // Predicated region
  $region18: #{_lambda_.3} parent=0 // pred_check
    _
  $region19: #{_lambda_.3} parent=0 // pred_check_branch
    %20 = sbr.rel (0) target = $region21
  $region20: #{_lambda_.3} parent=0 // pred_region
    _
  $region21: #{_lambda_.3} parent=0 // pred_fallthru
    _
  // Predicated region
  $region22: #{_lambda_.3} parent=0 // pred_check
    _
  $region23: #{_lambda_.3} parent=0 // pred_check_branch
    %22 = sbr.rel (0) target = $region25
  $region24: #{_lambda_.3} parent=0 // pred_region
    _
  $region25: #{_lambda_.3} parent=0 // pred_fallthru
    _
  %v24 = vld [vmem:[%s0] sm:$0xf]
  %v25 = vld [vmem:[%s1] sm:$0xf]
  %v26 = vld [vmem:[%s1 + $0x4] sm:$0xf]
  %v27 = vld [vmem:[%s1 + $0x8] sm:$0xf]
  %v28 = vld [vmem:[%s1 + $0xc] sm:$0xf]
  %v29 = vld [vmem:[%s1 + $0x10] sm:$0xf]
  %v30 = vld [vmem:[%s1 + $0x14] sm:$0xf]
  %v31 = vld [vmem:[%s1 + $0x18] sm:$0xf]
  %v32 = vld [vmem:[%s1 + $0x1c] sm:$0xf]
  %v33 = vld [vmem:[%s1 + $0x20] sm:$0xf]
  %v34 = vld [vmem:[%s1 + $0x24] sm:$0xf]
  %v35 = vld [vmem:[%s1 + $0x28] sm:$0xf]
  %v36 = vld [vmem:[%s1 + $0x2c] sm:$0xf]
  %v37 = vld [vmem:[%s1 + $0x30] sm:$0xf]
  %v38 = vld [vmem:[%s1 + $0x34] sm:$0xf]
  %v39 = vld [vmem:[%s1 + $0x38] sm:$0xf]
  %v40 = vld [vmem:[%s1 + $0x3c] sm:$0xf]
  %v41 = vld [vmem:[%s2] sm:$0xf]
  %v42 = vld [vmem:[%s2 + $0x4] sm:$0xf]
  %v43 = vld [vmem:[%s2 + $0x8] sm:$0xf]
  %v44 = vld [vmem:[%s2 + $0xc] sm:$0xf]
  %v45 = vld [vmem:[%s2 + $0x10] sm:$0xf]
  %v46 = vld [vmem:[%s2 + $0x14] sm:$0xf]
  %v47 = vld [vmem:[%s2 + $0x18] sm:$0xf]
  %v48 = vld [vmem:[%s2 + $0x1c] sm:$0xf]
  %v49 = vld [vmem:[%s2 + $0x20] sm:$0xf]
  %v50 = vld [vmem:[%s2 + $0x24] sm:$0xf]
  %v51 = vld [vmem:[%s2 + $0x28] sm:$0xf]
  %v52 = vld [vmem:[%s2 + $0x2c] sm:$0xf]
  %v53 = vld [vmem:[%s2 + $0x30] sm:$0xf]
  %v54 = vld [vmem:[%s2 + $0x34] sm:$0xf]
  %v55 = vld [vmem:[%s2 + $0x38] sm:$0xf]
  %v56 = vld [vmem:[%s2 + $0x3c] sm:$0xf]
  %v57 = vld [vmem:[%s3] sm:$0x1]
  %v58 = vld [vmem:[%s4] sm:$0x1]
  %v75 = vunpack.c.l.b16 %v25
  %v76 = vunpack.c.l.b16 %v26
  %v77 = vunpack.c.l.b16 %v27
  %v78 = vunpack.c.l.b16 %v28
  %v79 = vunpack.c.l.b16 %v29
  %v80 = vunpack.c.l.b16 %v30
  %v81 = vunpack.c.l.b16 %v31
  %v82 = vunpack.c.l.b16 %v32
  %v83 = vunpack.c.l.b16 %v33
  %v84 = vunpack.c.l.b16 %v34
  %v85 = vunpack.c.l.b16 %v35
  %v86 = vunpack.c.l.b16 %v36
  %v87 = vunpack.c.l.b16 %v37
  %v88 = vunpack.c.l.b16 %v38
  %v89 = vunpack.c.l.b16 %v39
  %v90 = vunpack.c.l.b16 %v40
  %v91 = vpack.c.b16 %v76, %v75
  %v92 = vpack.c.b16 %v78, %v77
  %v93 = vpack.c.b16 %v80, %v79
  %v94 = vpack.c.b16 %v82, %v81
  %v95 = vpack.c.b16 %v84, %v83
  %v96 = vpack.c.b16 %v86, %v85
  %v97 = vpack.c.b16 %v88, %v87
  %v98 = vpack.c.b16 %v90, %v89
  %107 = vmatprep.subr.bf16.mxu0 0
  %108 = vmatpush1.bf16.msra.mxu0 %v91
  %109 = vmatprep.subr.bf16.mxu0 0
  %110 = vmatpush1.bf16.msra.mxu0 %v92
  %111 = vmatprep.subr.bf16.mxu0 0
  %112 = vmatpush1.bf16.msra.mxu0 %v93
  %113 = vmatprep.subr.bf16.mxu0 0
  %114 = vmatpush1.bf16.msra.mxu0 %v94
  %115 = vmatprep.subr.bf16.mxu0 0
  %116 = vmatpush1.bf16.msra.mxu0 %v95
  %117 = vmatprep.subr.bf16.mxu0 0
  %118 = vmatpush1.bf16.msra.mxu0 %v96
  %119 = vmatprep.subr.bf16.mxu0 0
  %120 = vmatpush1.bf16.msra.mxu0 %v97
  %121 = vmatprep.subr.bf16.mxu0 0
  %122 = vmatpush1.bf16.msra.mxu0 %v98
  %123 = vmatprep.subr.bf16.mxu0 0
  %124 = vmatpush1.bf16.msra.mxu0 0
  %125 = vmatprep.subr.bf16.mxu0 0
  %126 = vmatpush1.bf16.msra.mxu0 0
  %127 = vmatprep.subr.bf16.mxu0 0
  %128 = vmatpush1.bf16.msra.mxu0 0
  %129 = vmatprep.subr.bf16.mxu0 0
  %130 = vmatpush1.bf16.msra.mxu0 0
  %131 = vmatprep.subr.bf16.mxu0 0
  %132 = vmatpush1.bf16.msra.mxu0 0
  %133 = vmatprep.subr.bf16.mxu0 0
  %134 = vmatpush1.bf16.msra.mxu0 0
  %135 = vmatprep.subr.bf16.mxu0 0
  %136 = vmatpush1.bf16.msra.mxu0 0
  %137 = vmatprep.subr.bf16.mxu0 0
  %138 = vmatpush1.bf16.msra.mxu0 0
  %139 = vmatprep.mubr.bf16.mxu0 0
  %140 = vmatmul.mubr.bf16.gmra.mrb[0].mxu0 %v24
  %v141 = vpop.f32.mrb[0].mxu0
  %v142 = vadd.f32 0.0, %v141
  %v143 = vpop.f32.mrb[0].mxu0
  %v144 = vpop.f32.mrb[0].mxu0
  %v145 = vpop.f32.mrb[0].mxu0
  %146 = vdwg.mxu0
  %v147 = vmul.f32 %v142, 0.5
  %v148 = vmul.f32 %v142, 0.70710677
  %v149 = verf.f32.pop %v148
  %v150 = vadd.f32 %v149, 1.0
  %v151 = vmul.f32 %v147, %v150
  %v152 = vpack.c.bf16 %v151, %v151
  %v169 = vunpack.c.l.b16 %v41
  %v170 = vunpack.c.l.b16 %v42
  %v171 = vunpack.c.l.b16 %v43
  %v172 = vunpack.c.l.b16 %v44
  %v173 = vunpack.c.l.b16 %v45
  %v174 = vunpack.c.l.b16 %v46
  %v175 = vunpack.c.l.b16 %v47
  %v176 = vunpack.c.l.b16 %v48
  %v177 = vunpack.c.l.b16 %v49
  %v178 = vunpack.c.l.b16 %v50
  %v179 = vunpack.c.l.b16 %v51
  %v180 = vunpack.c.l.b16 %v52
  %v181 = vunpack.c.l.b16 %v53
  %v182 = vunpack.c.l.b16 %v54
  %v183 = vunpack.c.l.b16 %v55
  %v184 = vunpack.c.l.b16 %v56
  %v185 = vpack.c.b16 %v170, %v169
  %v186 = vpack.c.b16 %v172, %v171
  %v187 = vpack.c.b16 %v174, %v173
  %v188 = vpack.c.b16 %v176, %v175
  %v189 = vpack.c.b16 %v178, %v177
  %v190 = vpack.c.b16 %v180, %v179
  %v191 = vpack.c.b16 %v182, %v181
  %v192 = vpack.c.b16 %v184, %v183
  %201 = vmatprep.subr.bf16.mxu0 0
  %202 = vmatpush1.bf16.msra.mxu0 %v185
  %203 = vmatprep.subr.bf16.mxu0 0
  %204 = vmatpush1.bf16.msra.mxu0 %v186
  %205 = vmatprep.subr.bf16.mxu0 0
  %206 = vmatpush1.bf16.msra.mxu0 %v187
  %207 = vmatprep.subr.bf16.mxu0 0
  %208 = vmatpush1.bf16.msra.mxu0 %v188
  %209 = vmatprep.subr.bf16.mxu0 0
  %210 = vmatpush1.bf16.msra.mxu0 %v189
  %211 = vmatprep.subr.bf16.mxu0 0
  %212 = vmatpush1.bf16.msra.mxu0 %v190
  %213 = vmatprep.subr.bf16.mxu0 0
  %214 = vmatpush1.bf16.msra.mxu0 %v191
  %215 = vmatprep.subr.bf16.mxu0 0
  %216 = vmatpush1.bf16.msra.mxu0 %v192
  %217 = vmatprep.subr.bf16.mxu0 0
  %218 = vmatpush1.bf16.msra.mxu0 0
  %219 = vmatprep.subr.bf16.mxu0 0
  %220 = vmatpush1.bf16.msra.mxu0 0
  %221 = vmatprep.subr.bf16.mxu0 0
  %222 = vmatpush1.bf16.msra.mxu0 0
  %223 = vmatprep.subr.bf16.mxu0 0
  %224 = vmatpush1.bf16.msra.mxu0 0
  %225 = vmatprep.subr.bf16.mxu0 0
  %226 = vmatpush1.bf16.msra.mxu0 0
  %227 = vmatprep.subr.bf16.mxu0 0
  %228 = vmatpush1.bf16.msra.mxu0 0
  %229 = vmatprep.subr.bf16.mxu0 0
  %230 = vmatpush1.bf16.msra.mxu0 0
  %231 = vmatprep.subr.bf16.mxu0 0
  %232 = vmatpush1.bf16.msra.mxu0 0
  %233 = vmatprep.mubr.bf16.mxu0 0
  %234 = vmatmul.mubr.bf16.gmra.mrb[0].mxu0 %v152
  %v235 = vpop.f32.mrb[0].mxu0
  %v236 = vadd.f32 0.0, %v235
  %v237 = vpop.f32.mrb[0].mxu0
  %v238 = vpop.f32.mrb[0].mxu0
  %v239 = vpop.f32.mrb[0].mxu0
  %240 = vdwg.mxu0
  %v241 = vadd.f32 %v142, %v236
  %v242 = vlaneseq
  %v243 = vand.u32 %v242, 127
  %244 = vadd.xlane.f32.xlu0 %v241
  %v245 = vpop.xlane.xlu0 %244
  %v246 = vmul.f32 %v245, 0.03125
  %vm247 = vcmp.lt.s32.totalorder %v243, 32
  %v248 = vsub.f32 %v241, %v246
  %v249 = vsel %vm247, %v248, 0.0
  %v250 = vmul.f32 %v249, %v249
  %251 = vadd.xlane.f32.xlu0 %v250
  %v252 = vpop.xlane.xlu0 %251
  %v253 = vmul.f32 %v252, 0.03125
  %v254 = vadd.f32 %v253, 1e-05
  %v255 = vrsqrt.pop %v254
  %v256 = vmul.f32 %v249, %v255
  %v258 = vlaneseq
  %v259 = vshrl.u32 %v258, 7
  %v260 = vsub.s32 0, %v259
  %v261 = vrot.slane %v57, %v260
  %v263 = vmul.f32 %v256, %v261
  %v265 = vlaneseq
  %v266 = vshrl.u32 %v265, 7
  %v267 = vsub.s32 0, %v266
  %v268 = vrot.slane %v58, %v267
  %v270 = vadd.f32 %v263, %v268
  %v271 = vmul.f32 %v270, %v270
  %272 = vadd.xlane.f32.xlu0 %v271
  %v273 = vpop.xlane.xlu0 %272
  %v274 = vadd.f32 %v273, 1e-12
  %v275 = vrsqrt.pop %v274
  %v276 = vmul.f32 %v270, %v275
  %v277 = vpack.c.bf16 %v276, %v276
  %v278 = vld [vmem:[%s5] sm:$0xf]
  %279 = vmatprep.subr.bf16.mxu0 0
  %280 = vmatpush1.bf16.xpose.msra.mxu0 %v278
  %281 = vmatprep.subr.bf16.mxu0 0
  %282 = vmatpush1.bf16.xpose.msra.mxu0 0
  %283 = vmatprep.subr.bf16.mxu0 0
  %284 = vmatpush1.bf16.xpose.msra.mxu0 0
  %285 = vmatprep.subr.bf16.mxu0 0
  %286 = vmatpush1.bf16.xpose.msra.mxu0 0
  %287 = vmatprep.subr.bf16.mxu0 0
  %288 = vmatpush1.bf16.xpose.msra.mxu0 0
  %289 = vmatprep.subr.bf16.mxu0 0
  %290 = vmatpush1.bf16.xpose.msra.mxu0 0
  %291 = vmatprep.subr.bf16.mxu0 0
  %292 = vmatpush1.bf16.xpose.msra.mxu0 0
  %293 = vmatprep.subr.bf16.mxu0 0
  %294 = vmatpush1.bf16.xpose.msra.mxu0 0
  %295 = vmatprep.subr.bf16.mxu0 0
  %296 = vmatpush1.bf16.xpose.msra.mxu0 0
  %297 = vmatprep.subr.bf16.mxu0 0
  %298 = vmatpush1.bf16.xpose.msra.mxu0 0
  %299 = vmatprep.subr.bf16.mxu0 0
  %300 = vmatpush1.bf16.xpose.msra.mxu0 0
  %301 = vmatprep.subr.bf16.mxu0 0
  %302 = vmatpush1.bf16.xpose.msra.mxu0 0
  %303 = vmatprep.subr.bf16.mxu0 0
  %304 = vmatpush1.bf16.xpose.msra.mxu0 0
  %305 = vmatprep.subr.bf16.mxu0 0
  %306 = vmatpush1.bf16.xpose.msra.mxu0 0
  %307 = vmatprep.subr.bf16.mxu0 0
  %308 = vmatpush1.bf16.xpose.msra.mxu0 0
  %309 = vmatprep.subr.bf16.mxu0 0
  %310 = vmatpush1.bf16.xpose.msra.mxu0 0
  %311 = vmatprep.mubr.bf16.mxu0 0
  %312 = vmatmul.mubr.bf16.gmra.mrb[0].mxu0 %v277
  %v313 = vpop.f32.mrb[0].mxu0
  %v314 = vadd.f32 0.0, %v313
  %v315 = vpop.f32.mrb[0].mxu0
  %v316 = vpop.f32.mrb[0].mxu0
  %v317 = vpop.f32.mrb[0].mxu0
  %318 = vdwg.mxu0
  %vm319 = vcmask 64512
  %320 = vst.msk [vmem:[%s6] sm:$0xff] %vm319, %v314
  // Predicated region
  $region26: #{_lambda_.3} parent=0 // pred_check
    _
  $region27: #{_lambda_.3} parent=0 // pred_check_branch
    %322 = sbr.rel (0) target = $region29
  $region28: #{_lambda_.3} parent=0 // pred_region
    _
  $region29: #{_lambda_.3} parent=0 // pred_fallthru
    _
  // Predicated region
  $region30: #{_lambda_.3} parent=0 // pred_check
    _
  $region31: #{_lambda_.3} parent=0 // pred_check_branch
    %324 = sbr.rel (0) target = $region33
  $region32: #{_lambda_.3} parent=0 // pred_region
    _
  $region33: #{_lambda_.3} parent=0 // pred_fallthru
    _

</llo_original>
